<compile_context>
chip_gen: v7x
topology: tpu7x:2x2x1
jax: 0.10.0
libtpu: 0.0.40
codegen_flags: <defaults>
</compile_context>

<pallas_src>
import functools

import jax
import jax.numpy as jnp
from jax import lax
from jax.experimental import pallas as pl
from jax.experimental.pallas import tpu as pltpu


def _supcon_kernel(alab_ref, clab_ref, anchor_ref, contrast_ref, out_ref,
                   m_sc, l_sc, pd_sc, pc_sc, *,
                   temperature, base_temperature, n_contrast, tile_a, tile_c):
    j = pl.program_id(1)

    # ---- init accumulators at the start of the contrast (reduction) axis ----
    @pl.when(j == 0)
    def _():
        m_sc[...] = jnp.full_like(m_sc, -jnp.inf)
        l_sc[...] = jnp.zeros_like(l_sc)
        pd_sc[...] = jnp.zeros_like(pd_sc)
        pc_sc[...] = jnp.zeros_like(pc_sc)

    # ---- scaled logits tile: (a / T) @ c^T, no explicit transpose ----
    inv_t = 1.0 / temperature
    a = anchor_ref[...] * inv_t                      # fold 1/T into [tA, D]
    c = contrast_ref[...]
    s = lax.dot_general(a, c,
                        dimension_numbers=(((1,), (1,)), ((), ())),
                        preferred_element_type=jnp.float32)   # [tA, tC] f32

    # ---- masks built in-kernel from index arithmetic + tiny label vectors ----
    row = pl.program_id(0) * tile_a + lax.broadcasted_iota(
        jnp.int32, (tile_a, tile_c), 0)
    col = j * tile_c + lax.broadcasted_iota(
        jnp.int32, (tile_a, tile_c), 1)

    col_valid = col < n_contrast                       # exclude padded columns
    lmask = jnp.logical_and(row != col, col_valid)     # self-contrast removal
    pmask = jnp.logical_and(alab_ref[...] == clab_ref[...], lmask)  # positives

    lmask_f = lmask.astype(jnp.float32)
    pmask_f = pmask.astype(jnp.float32)

    # ---- online masked-softmax denominator over the contrast axis ----
    m_new = jnp.maximum(m_sc[...], jnp.max(s, axis=1, keepdims=True))
    alpha = jnp.exp(m_sc[...] - m_new)
    p = jnp.exp(s - m_new) * lmask_f
    l_sc[...] = alpha * l_sc[...] + jnp.sum(p, axis=1, keepdims=True)
    m_sc[...] = m_new

    # ---- positive-pair statistics (raw logits; shift-independent) ----
    pd_sc[...] += jnp.sum(pmask_f * s, axis=1, keepdims=True)
    pc_sc[...] += jnp.sum(pmask_f, axis=1, keepdims=True)

    # ---- finalize: per-anchor loss on the last contrast step ----
    @pl.when(j == pl.num_programs(1) - 1)
    def _():
        # mean_log_prob_pos = pos_dot/pos_cnt - logsumexp_masked
        #                   = pos_dot/pos_cnt - (running_max + log(running_denom))
        mean_lp = pd_sc[...] / pc_sc[...] - (m_sc[...] + jnp.log(l_sc[...]))
        out_ref[...] = (-(temperature / base_temperature)) * mean_lp


def _round_up(x, m):
    return ((x + m - 1) // m) * m


def supcon_loss(features, labels=None, mask=None, *,
                temperature=0.07, contrast_mode='one', base_temperature=0.07,
                tile_a=256, tile_c=512):
    """SupConLoss forward (matches the PyTorch module's semantics)."""
    if features.ndim < 3:
        raise ValueError('`features` needs to be [bsz, n_views, ...]')
    if features.ndim > 3:
        features = features.reshape(features.shape[0], features.shape[1], -1)
    bsz, n_views, dim = features.shape

    if labels is not None and mask is not None:
        raise ValueError('Cannot define both `labels` and `mask`')
    if mask is not None:
        # TODO(synk): arbitrary [bsz,bsz] contrastive masks need an in-kernel 2D
        # gather (or a DMA'd mask tile); only labels / SimCLR paths implemented.
        raise NotImplementedError('explicit `mask` path not implemented')
    if labels is None:
        labels = jnp.arange(bsz, dtype=jnp.int32)   # identity mask == same index
    else:
        labels = jnp.reshape(labels, (-1,)).astype(jnp.int32)
        if labels.shape[0] != bsz:
            raise ValueError('Num of labels does not match num of features')

    # view-major contrast stacking == torch.cat(torch.unbind(features, 1), 0)
    contrast_feature = jnp.transpose(features, (1, 0, 2)).reshape(
        bsz * n_views, dim)
    contrast_labels = jnp.tile(labels, n_views)

    if contrast_mode == 'one':
        anchor_feature = features[:, 0]
        anchor_labels = labels
        anchor_count = 1
    elif contrast_mode == 'all':
        anchor_feature = contrast_feature
        anchor_labels = contrast_labels
        anchor_count = n_views
    else:
        raise ValueError(f'Unknown mode: {contrast_mode}')

    n_anchor = bsz * anchor_count
    n_contrast = bsz * n_views

    # lane/sublane-aligned tiles (whole problem if smaller than one tile).
    # Sized for v7x's 64 MiB VMEM with headroom even at large D.
    t_a = min(tile_a, _round_up(n_anchor, 8))
    t_c = min(tile_c, _round_up(n_contrast, 128))
    a_pad = _round_up(n_anchor, t_a)
    c_pad = _round_up(n_contrast, t_c)

    anchor_feature = jnp.pad(anchor_feature, ((0, a_pad - n_anchor), (0, 0)))
    contrast_feature = jnp.pad(contrast_feature,
                               ((0, c_pad - n_contrast), (0, 0)))
    alab = jnp.pad(anchor_labels, (0, a_pad - n_anchor)).reshape(a_pad, 1)
    clab = jnp.pad(contrast_labels, (0, c_pad - n_contrast)).reshape(1, c_pad)

    kernel = functools.partial(
        _supcon_kernel,
        temperature=float(temperature),
        base_temperature=float(base_temperature),
        n_contrast=n_contrast, tile_a=t_a, tile_c=t_c)

    out = pl.pallas_call(
        kernel,
        out_shape=jax.ShapeDtypeStruct((a_pad, 1), jnp.float32),
        grid_spec=pltpu.PrefetchScalarGridSpec(
            num_scalar_prefetch=0,
            grid=(a_pad // t_a, c_pad // t_c),
            in_specs=[
                pl.BlockSpec((t_a, 1), lambda i, j: (i, 0)),    # anchor labels
                pl.BlockSpec((1, t_c), lambda i, j: (0, j)),    # contrast labels
                pl.BlockSpec((t_a, dim), lambda i, j: (i, 0)),  # anchor features
                pl.BlockSpec((t_c, dim), lambda i, j: (j, 0)),  # contrast feats
            ],
            out_specs=pl.BlockSpec((t_a, 1), lambda i, j: (i, 0)),
            scratch_shapes=[
                pltpu.VMEM((t_a, 1), jnp.float32),   # running max
                pltpu.VMEM((t_a, 1), jnp.float32),   # running denom
                pltpu.VMEM((t_a, 1), jnp.float32),   # pos_dot
                pltpu.VMEM((t_a, 1), jnp.float32),   # pos_cnt
            ]),
        compiler_params=pltpu.CompilerParams(
            dimension_semantics=("parallel", "arbitrary")),
    )(alab, clab, anchor_feature, contrast_feature)

    # drop padded anchor rows, then mean == loss.view(anchor_count, bsz).mean()
    return jnp.mean(out[:n_anchor, 0])


def _supcon_loss_ref(features, labels=None, temperature=0.07,
                     contrast_mode='one', base_temperature=0.07):
    """Pure-JAX reference mirroring the PyTorch module."""
    bsz, n_views, dim = features.shape
    if labels is None:
        base_mask = jnp.eye(bsz, dtype=jnp.float32)
    else:
        labels = jnp.reshape(labels, (-1, 1))
        base_mask = (labels == labels.T).astype(jnp.float32)
    contrast = jnp.transpose(features, (1, 0, 2)).reshape(bsz * n_views, dim)
    if contrast_mode == 'one':
        anchor = features[:, 0]
        anchor_count = 1
    else:
        anchor = contrast
        anchor_count = n_views
    n_a = bsz * anchor_count
    n_c = bsz * n_views
    logits = anchor @ contrast.T / temperature
    logits = logits - jnp.max(logits, axis=1, keepdims=True)
    lmask = 1.0 - jnp.eye(n_a, n_c, dtype=jnp.float32)
    mask = jnp.tile(base_mask, (anchor_count, n_views)) * lmask
    exp_logits = jnp.exp(logits) * lmask
    log_prob = logits - jnp.log(jnp.sum(exp_logits, axis=1, keepdims=True))
    mean_log_prob_pos = jnp.sum(mask * log_prob, axis=1) / jnp.sum(mask, axis=1)
    return jnp.mean(-(temperature / base_temperature) * mean_log_prob_pos)


if __name__ == "__main__":
    key = jax.random.PRNGKey(0)
    bsz, n_views, dim = 4, 2, 32
    feats = jax.random.normal(key, (bsz, n_views, dim), dtype=jnp.float32)
    # SupCon features are typically L2-normalized embeddings
    feats = feats / jnp.linalg.norm(feats, axis=-1, keepdims=True)

    # unsupervised (SimCLR-style) path, contrast_mode='one'
    loss = jax.block_until_ready(supcon_loss(feats))
    ref = _supcon_loss_ref(feats)
    assert jnp.allclose(loss, ref, rtol=1e-4, atol=1e-4), (loss, ref)

    # supervised labels path, contrast_mode='all'
    labels = jnp.array([0, 1, 0, 1], dtype=jnp.int32)
    loss2 = jax.block_until_ready(
        supcon_loss(feats, labels=labels, contrast_mode='all'))
    ref2 = _supcon_loss_ref(feats, labels=labels, contrast_mode='all')
    assert jnp.allclose(loss2, ref2, rtol=1e-4, atol=1e-4), (loss2, ref2)

    print("KERNEL_OK")
</pallas_src>

<mosaic_0001>
module attributes {stable_mosaic.version = 11 : i64} {
  func.func @_supcon_kernel(%arg0: i32, %arg1: i32, %arg2: memref<8x1xi32, #tpu.memory_space<vmem>>, %arg3: memref<1x128xi32, #tpu.memory_space<vmem>>, %arg4: memref<8x32xf32, #tpu.memory_space<vmem>>, %arg5: memref<128x32xf32, #tpu.memory_space<vmem>>, %arg6: memref<8x1xf32, #tpu.memory_space<vmem>>, %arg7: memref<8x1xf32, #tpu.memory_space<vmem>>, %arg8: memref<8x1xf32, #tpu.memory_space<vmem>>, %arg9: memref<8x1xf32, #tpu.memory_space<vmem>>, %arg10: memref<8x1xf32, #tpu.memory_space<vmem>>) attributes {dimension_semantics = [#tpu.dimension_semantics<parallel>, #tpu.dimension_semantics<arbitrary>], iteration_bounds = array<i64: 1, 1>, scalar_prefetch = 0 : i64, scratch_operands = 4 : i64, tpu.core_type = #tpu.core_type<tc>, window_params = [{transform_indices = @transform_0, window_bounds = array<i64: 8, 1>}, {transform_indices = @transform_1, window_bounds = array<i64: 1, 128>}, {transform_indices = @transform_2, window_bounds = array<i64: 8, 32>}, {transform_indices = @transform_3, window_bounds = array<i64: 128, 32>}, {transform_indices = @transform_4, window_bounds = array<i64: 8, 1>}]} {
    %c0_i32 = arith.constant 0 : i32
    %0 = arith.cmpi eq, %arg1, %c0_i32 : i32
    %1 = arith.extui %0 : i1 to i32
    %c0_i32_0 = arith.constant 0 : i32
    %2 = arith.cmpi ne, %1, %c0_i32_0 : i32
    scf.if %2 {
      %cst_34 = arith.constant 0xFF800000 : f32
      %62 = vector.broadcast %cst_34 : f32 to vector<8x1xf32>
      %c0_35 = arith.constant 0 : index
      %c0_36 = arith.constant 0 : index
      %63 = vector.load %arg7[%c0_35, %c0_36] : memref<8x1xf32, #tpu.memory_space<vmem>>, vector<8x1xf32>
      tpu.vector_store %arg7[%c0_35, %c0_36], %62 {strides = array<i32>} : memref<8x1xf32, #tpu.memory_space<vmem>>, vector<8x1xf32>,
      %cst_37 = arith.constant 0.000000e+00 : f32
      %64 = vector.broadcast %cst_37 : f32 to vector<8x1xf32>
      %c0_38 = arith.constant 0 : index
      %c0_39 = arith.constant 0 : index
      %65 = vector.load %arg8[%c0_38, %c0_39] : memref<8x1xf32, #tpu.memory_space<vmem>>, vector<8x1xf32>
      tpu.vector_store %arg8[%c0_38, %c0_39], %64 {strides = array<i32>} : memref<8x1xf32, #tpu.memory_space<vmem>>, vector<8x1xf32>,
      %cst_40 = arith.constant 0.000000e+00 : f32
      %66 = vector.broadcast %cst_40 : f32 to vector<8x1xf32>
      %c0_41 = arith.constant 0 : index
      %c0_42 = arith.constant 0 : index
      %67 = vector.load %arg9[%c0_41, %c0_42] : memref<8x1xf32, #tpu.memory_space<vmem>>, vector<8x1xf32>
      tpu.vector_store %arg9[%c0_41, %c0_42], %66 {strides = array<i32>} : memref<8x1xf32, #tpu.memory_space<vmem>>, vector<8x1xf32>,
      %cst_43 = arith.constant 0.000000e+00 : f32
      %68 = vector.broadcast %cst_43 : f32 to vector<8x1xf32>
      %c0_44 = arith.constant 0 : index
      %c0_45 = arith.constant 0 : index
      %69 = vector.load %arg10[%c0_44, %c0_45] : memref<8x1xf32, #tpu.memory_space<vmem>>, vector<8x1xf32>
      tpu.vector_store %arg10[%c0_44, %c0_45], %68 {strides = array<i32>} : memref<8x1xf32, #tpu.memory_space<vmem>>, vector<8x1xf32>,
    } else {
    }
    %c0 = arith.constant 0 : index
    %c0_1 = arith.constant 0 : index
    %3 = vector.load %arg4[%c0, %c0_1] : memref<8x32xf32, #tpu.memory_space<vmem>>, vector<8x32xf32>
    %cst = arith.constant 14.2857141 : f32
    %4 = vector.broadcast %cst : f32 to vector<8x32xf32>
    %5 = arith.mulf %3, %4 : vector<8x32xf32>
    %c0_2 = arith.constant 0 : index
    %c0_3 = arith.constant 0 : index
    %6 = vector.load %arg5[%c0_2, %c0_3] : memref<128x32xf32, #tpu.memory_space<vmem>>, vector<128x32xf32>
    %cst_4 = arith.constant dense<0.000000e+00> : vector<8x128xf32>
    %7 = tpu.matmul %5, %6, %cst_4 {dimension_numbers = #tpu.dot_dimension_numbers<[1], [1], [0], [0], [0, 0, 1, 0], [], []>} : vector<8x32xf32>, vector<128x32xf32>, vector<8x128xf32> -> vector<8x128xf32>
    %c8_i32 = arith.constant 8 : i32
    %8 = arith.muli %arg0, %c8_i32 : i32
    %9 = tpu.iota {dimensions = array<i32: 0>} : vector<8x128xi32>
    %10 = vector.broadcast %8 : i32 to vector<8x128xi32>
    %11 = arith.addi %10, %9 : vector<8x128xi32>
    %c128_i32 = arith.constant 128 : i32
    %12 = arith.muli %arg1, %c128_i32 : i32
    %13 = tpu.iota {dimensions = array<i32: 1>} : vector<8x128xi32>
    %14 = vector.broadcast %12 : i32 to vector<8x128xi32>
    %15 = arith.addi %14, %13 : vector<8x128xi32>
    %c8_i32_5 = arith.constant 8 : i32
    %16 = vector.broadcast %c8_i32_5 : i32 to vector<8x128xi32>
    %17 = arith.cmpi slt, %15, %16 : vector<8x128xi32>
    %18 = arith.cmpi ne, %11, %15 : vector<8x128xi32>
    %19 = arith.andi %18, %17 : vector<8x128xi1>
    %c0_6 = arith.constant 0 : index
    %c0_7 = arith.constant 0 : index
    %20 = vector.load %arg2[%c0_6, %c0_7] : memref<8x1xi32, #tpu.memory_space<vmem>>, vector<8x1xi32>
    %c0_8 = arith.constant 0 : index
    %c0_9 = arith.constant 0 : index
    %21 = vector.load %arg3[%c0_8, %c0_9] : memref<1x128xi32, #tpu.memory_space<vmem>>, vector<1x128xi32>
    %22 = vector.broadcast %20 : vector<8x1xi32> to vector<8x128xi32>
    %23 = vector.broadcast %21 : vector<1x128xi32> to vector<8x128xi32>
    %24 = arith.cmpi eq, %22, %23 : vector<8x128xi32>
    %25 = arith.andi %24, %19 : vector<8x128xi1>
    %26 = arith.extui %19 : vector<8x128xi1> to vector<8x128xi32>
    %27 = arith.sitofp %26 : vector<8x128xi32> to vector<8x128xf32>
    %28 = arith.extui %25 : vector<8x128xi1> to vector<8x128xi32>
    %29 = arith.sitofp %28 : vector<8x128xi32> to vector<8x128xf32>
    %c0_10 = arith.constant 0 : index
    %c0_11 = arith.constant 0 : index
    %30 = vector.load %arg7[%c0_10, %c0_11] : memref<8x1xf32, #tpu.memory_space<vmem>>, vector<8x1xf32>
    %cst_12 = arith.constant dense<0xFF800000> : vector<8xf32>
    %31 = vector.multi_reduction <maximumf>, %7, %cst_12 [1] : vector<8x128xf32> to vector<8xf32>
    %32 = vector.shape_cast %31 : vector<8xf32> to vector<8x1xf32>
    %33 = arith.maximumf %30, %32 : vector<8x1xf32>
    %c0_13 = arith.constant 0 : index
    %c0_14 = arith.constant 0 : index
    %34 = vector.load %arg7[%c0_13, %c0_14] : memref<8x1xf32, #tpu.memory_space<vmem>>, vector<8x1xf32>
    %35 = arith.subf %34, %33 : vector<8x1xf32>
    %36 = math.exp %35 : vector<8x1xf32>
    %37 = vector.broadcast %33 : vector<8x1xf32> to vector<8x128xf32>
    %38 = arith.subf %7, %37 : vector<8x128xf32>
    %39 = math.exp %38 : vector<8x128xf32>
    %40 = arith.mulf %39, %27 : vector<8x128xf32>
    %c0_15 = arith.constant 0 : index
    %c0_16 = arith.constant 0 : index
    %41 = vector.load %arg8[%c0_15, %c0_16] : memref<8x1xf32, #tpu.memory_space<vmem>>, vector<8x1xf32>
    %42 = arith.mulf %36, %41 : vector<8x1xf32>
    %cst_17 = arith.constant dense<0.000000e+00> : vector<8xf32>
    %43 = vector.multi_reduction <add>, %40, %cst_17 [1] : vector<8x128xf32> to vector<8xf32>
    %44 = vector.shape_cast %43 : vector<8xf32> to vector<8x1xf32>
    %45 = arith.addf %42, %44 : vector<8x1xf32>
    %c0_18 = arith.constant 0 : index
    %c0_19 = arith.constant 0 : index
    %46 = vector.load %arg8[%c0_18, %c0_19] : memref<8x1xf32, #tpu.memory_space<vmem>>, vector<8x1xf32>
    tpu.vector_store %arg8[%c0_18, %c0_19], %45 {strides = array<i32>} : memref<8x1xf32, #tpu.memory_space<vmem>>, vector<8x1xf32>,
    %c0_20 = arith.constant 0 : index
    %c0_21 = arith.constant 0 : index
    %47 = vector.load %arg7[%c0_20, %c0_21] : memref<8x1xf32, #tpu.memory_space<vmem>>, vector<8x1xf32>
    tpu.vector_store %arg7[%c0_20, %c0_21], %33 {strides = array<i32>} : memref<8x1xf32, #tpu.memory_space<vmem>>, vector<8x1xf32>,
    %c0_22 = arith.constant 0 : index
    %c0_23 = arith.constant 0 : index
    %48 = vector.load %arg9[%c0_22, %c0_23] : memref<8x1xf32, #tpu.memory_space<vmem>>, vector<8x1xf32>
    %49 = arith.mulf %29, %7 : vector<8x128xf32>
    %cst_24 = arith.constant dense<0.000000e+00> : vector<8xf32>
    %50 = vector.multi_reduction <add>, %49, %cst_24 [1] : vector<8x128xf32> to vector<8xf32>
    %51 = vector.shape_cast %50 : vector<8xf32> to vector<8x1xf32>
    %52 = arith.addf %48, %51 : vector<8x1xf32>
    %c0_25 = arith.constant 0 : index
    %c0_26 = arith.constant 0 : index
    %53 = vector.load %arg9[%c0_25, %c0_26] : memref<8x1xf32, #tpu.memory_space<vmem>>, vector<8x1xf32>
    tpu.vector_store %arg9[%c0_25, %c0_26], %52 {strides = array<i32>} : memref<8x1xf32, #tpu.memory_space<vmem>>, vector<8x1xf32>,
    %c0_27 = arith.constant 0 : index
    %c0_28 = arith.constant 0 : index
    %54 = vector.load %arg10[%c0_27, %c0_28] : memref<8x1xf32, #tpu.memory_space<vmem>>, vector<8x1xf32>
    %cst_29 = arith.constant dense<0.000000e+00> : vector<8xf32>
    %55 = vector.multi_reduction <add>, %29, %cst_29 [1] : vector<8x128xf32> to vector<8xf32>
    %56 = vector.shape_cast %55 : vector<8xf32> to vector<8x1xf32>
    %57 = arith.addf %54, %56 : vector<8x1xf32>
    %c0_30 = arith.constant 0 : index
    %c0_31 = arith.constant 0 : index
    %58 = vector.load %arg10[%c0_30, %c0_31] : memref<8x1xf32, #tpu.memory_space<vmem>>, vector<8x1xf32>
    tpu.vector_store %arg10[%c0_30, %c0_31], %57 {strides = array<i32>} : memref<8x1xf32, #tpu.memory_space<vmem>>, vector<8x1xf32>,
    %c0_i32_32 = arith.constant 0 : i32
    %59 = arith.cmpi eq, %arg1, %c0_i32_32 : i32
    %60 = arith.extui %59 : i1 to i32
    %c0_i32_33 = arith.constant 0 : i32
    %61 = arith.cmpi ne, %60, %c0_i32_33 : i32
    scf.if %61 {
      %c0_34 = arith.constant 0 : index
      %c0_35 = arith.constant 0 : index
      %62 = vector.load %arg9[%c0_34, %c0_35] : memref<8x1xf32, #tpu.memory_space<vmem>>, vector<8x1xf32>
      %c0_36 = arith.constant 0 : index
      %c0_37 = arith.constant 0 : index
      %63 = vector.load %arg10[%c0_36, %c0_37] : memref<8x1xf32, #tpu.memory_space<vmem>>, vector<8x1xf32>
      %64 = arith.divf %62, %63 : vector<8x1xf32>
      %c0_38 = arith.constant 0 : index
      %c0_39 = arith.constant 0 : index
      %65 = vector.load %arg7[%c0_38, %c0_39] : memref<8x1xf32, #tpu.memory_space<vmem>>, vector<8x1xf32>
      %c0_40 = arith.constant 0 : index
      %c0_41 = arith.constant 0 : index
      %66 = vector.load %arg8[%c0_40, %c0_41] : memref<8x1xf32, #tpu.memory_space<vmem>>, vector<8x1xf32>
      %67 = math.log %66 : vector<8x1xf32>
      %68 = arith.addf %65, %67 : vector<8x1xf32>
      %69 = arith.subf %64, %68 : vector<8x1xf32>
      %cst_42 = arith.constant -1.000000e+00 : f32
      %70 = vector.broadcast %cst_42 : f32 to vector<8x1xf32>
      %71 = arith.mulf %70, %69 : vector<8x1xf32>
      %c0_43 = arith.constant 0 : index
      %c0_44 = arith.constant 0 : index
      %72 = vector.load %arg6[%c0_43, %c0_44] : memref<8x1xf32, #tpu.memory_space<vmem>>, vector<8x1xf32>
      tpu.vector_store %arg6[%c0_43, %c0_44], %71 {strides = array<i32>} : memref<8x1xf32, #tpu.memory_space<vmem>>, vector<8x1xf32>,
    } else {
    }
    return
  }
  func.func @transform_0(%arg0: i32, %arg1: i32) -> (i32, i32) {
    %c0_i32 = arith.constant 0 : i32
    %c0_i32_0 = arith.constant 0 : i32
    return %arg0, %c0_i32 : i32, i32
  }
  func.func @transform_1(%arg0: i32, %arg1: i32) -> (i32, i32) {
    %c0_i32 = arith.constant 0 : i32
    %c0_i32_0 = arith.constant 0 : i32
    return %c0_i32, %arg1 : i32, i32
  }
  func.func @transform_2(%arg0: i32, %arg1: i32) -> (i32, i32) {
    %c0_i32 = arith.constant 0 : i32
    %c0_i32_0 = arith.constant 0 : i32
    return %arg0, %c0_i32 : i32, i32
  }
  func.func @transform_3(%arg0: i32, %arg1: i32) -> (i32, i32) {
    %c0_i32 = arith.constant 0 : i32
    %c0_i32_0 = arith.constant 0 : i32
    return %arg1, %c0_i32 : i32, i32
  }
  func.func @transform_4(%arg0: i32, %arg1: i32) -> (i32, i32) {
    %c0_i32 = arith.constant 0 : i32
    %c0_i32_0 = arith.constant 0 : i32
    return %arg0, %c0_i32 : i32, i32
  }
}

</mosaic_0001>

<llo_original>
// kernel: tpu_custom_call.1
$region0: #{tpu_custom_call.1}
  #allocation0 [shape = 'u32[]', space=smem, size = 0x4, offset = 0x4, fixed_abs, tag = 'smem constant byte address 0x4 - core index']
  #allocation1 [shape = 'u32[144,128]{1,0:T(1,128)}', space=vmem, size = 0x12000, scoped, tag = 'internal scratch']
  #allocation2 [shape = 'f32[8,1]{1,0:T(8,128)}', space=vmem, size = 0x1000, scoped, tag = 'scratch operand']
  #allocation3 [shape = 'f32[8,1]{1,0:T(8,128)}', space=vmem, size = 0x1000, scoped, tag = 'scratch operand']
  #allocation4 [shape = 'f32[8,1]{1,0:T(8,128)}', space=vmem, size = 0x1000, scoped, tag = 'scratch operand']
  #allocation5 [shape = 'f32[8,1]{1,0:T(8,128)}', space=vmem, size = 0x1000, scoped, tag = 'scratch operand']
  %s0 = inlined_call_operand.vmem [shape: s32[8,1], index: 0, kind: input, shape index: {}]
  %s1 = inlined_call_operand.vmem [shape: s32[1,128], index: 1, kind: input, shape index: {}]
  %s2 = inlined_call_operand.vmem [shape: f32[8,32], index: 2, kind: input, shape index: {}]
  %s3 = inlined_call_operand.vmem [shape: f32[128,32], index: 3, kind: input, shape index: {}]
  %s4 = inlined_call_operand.vmem [shape: f32[8,1], index: 4, kind: output, shape index: {}]
  %s5 = sld [smem:[#allocation0]]
  $region34: #{tpu_custom_call.1} parent=0
    _
  %s7 = ssub.s32 1, %s5
  %s8 = scalar_select 0, %s7, %s5
  // Predicated region
  $region2: #{tpu_custom_call.1} parent=0 // pred_check
    _
  $region3: #{tpu_custom_call.1} parent=0 // pred_check_branch
    %10 = sbr.rel (0) target = $region5
  $region4: #{tpu_custom_call.1} parent=0 // pred_region
    _
  $region5: #{tpu_custom_call.1} parent=0 // pred_fallthru
    _
  // Predicated region
  $region6: #{tpu_custom_call.1} parent=0 // pred_check
    _
  $region7: #{tpu_custom_call.1} parent=0 // pred_check_branch
    %12 = sbr.rel (0) target = $region9
  $region8: #{tpu_custom_call.1} parent=0 // pred_region
    _
  $region9: #{tpu_custom_call.1} parent=0 // pred_fallthru
    _
  // Predicated region
  $region10: #{tpu_custom_call.1} parent=0 // pred_check
    _
  $region11: #{tpu_custom_call.1} parent=0 // pred_check_branch
    %14 = sbr.rel (0) target = $region13
  $region12: #{tpu_custom_call.1} parent=0 // pred_region
    _
  $region13: #{tpu_custom_call.1} parent=0 // pred_fallthru
    _
  // Predicated region
  $region14: #{tpu_custom_call.1} parent=0 // pred_check
    _
  $region15: #{tpu_custom_call.1} parent=0 // pred_check_branch
    %16 = sbr.rel (0) target = $region17
  $region16: #{tpu_custom_call.1} parent=0 // pred_region
    _
  $region17: #{tpu_custom_call.1} parent=0 // pred_fallthru
    _
  %p17 = scmp.eq.s32.totalorder 0, 0
  // Predicated region
  $region18: #{tpu_custom_call.1} parent=0 // pred_check
    %p18 = pneg %p17
  $region19: #{tpu_custom_call.1} parent=0 // pred_check_branch
    %20 = sbr.rel (%p18) target = $region21
  $region20: #{tpu_custom_call.1} parent=0 // pred_region
    %vm21 = vcmask 7168
    %22 = vst.msk [vmem:[#allocation2] sm:$0xff] %vm21, -inf
    %23 = vst.msk [vmem:[#allocation3] sm:$0xff] %vm21, 0.0
    %24 = vst.msk [vmem:[#allocation4] sm:$0xff] %vm21, 0.0
    %25 = vst.msk [vmem:[#allocation5] sm:$0xff] %vm21, 0.0
  $region21: #{tpu_custom_call.1} parent=0 // pred_fallthru
    _
  %v26 = vld [vmem:[%s2] sm:$0xff]
  %v27 = vmul.f32 %v26, 14.285714
  %v28 = vld [vmem:[%s3] sm:$0xff]
  %v29 = vld [vmem:[%s3 + $0x8] sm:$0xff]
  %v30 = vld [vmem:[%s3 + $0x10] sm:$0xff]
  %v31 = vld [vmem:[%s3 + $0x18] sm:$0xff]
  %v32 = vld [vmem:[%s3 + $0x20] sm:$0xff]
  %v33 = vld [vmem:[%s3 + $0x28] sm:$0xff]
  %v34 = vld [vmem:[%s3 + $0x30] sm:$0xff]
  %v35 = vld [vmem:[%s3 + $0x38] sm:$0xff]
  %v36 = vld [vmem:[%s3 + $0x40] sm:$0xff]
  %v37 = vld [vmem:[%s3 + $0x48] sm:$0xff]
  %v38 = vld [vmem:[%s3 + $0x50] sm:$0xff]
  %v39 = vld [vmem:[%s3 + $0x58] sm:$0xff]
  %v40 = vld [vmem:[%s3 + $0x60] sm:$0xff]
  %v41 = vld [vmem:[%s3 + $0x68] sm:$0xff]
  %v42 = vld [vmem:[%s3 + $0x70] sm:$0xff]
  %v43 = vld [vmem:[%s3 + $0x78] sm:$0xff]
  %vm44 = vcmask 261120
  %v46 = vsel %vm44, %v27, 0
  %v49 = vsel %vm44, %v28, 0
  %v52 = vsel %vm44, %v29, 0
  %v55 = vsel %vm44, %v30, 0
  %v58 = vsel %vm44, %v31, 0
  %v61 = vsel %vm44, %v32, 0
  %v64 = vsel %vm44, %v33, 0
  %v67 = vsel %vm44, %v34, 0
  %v70 = vsel %vm44, %v35, 0
  %v73 = vsel %vm44, %v36, 0
  %v76 = vsel %vm44, %v37, 0
  %v79 = vsel %vm44, %v38, 0
  %v82 = vsel %vm44, %v39, 0
  %v85 = vsel %vm44, %v40, 0
  %v88 = vsel %vm44, %v41, 0
  %v91 = vsel %vm44, %v42, 0
  %v94 = vsel %vm44, %v43, 0
  %96 = vmatprep.subr.mxu0 0.0
  %97 = vmatpush1.xpose.msra.mxu0 %v49
  %98 = vmatprep.subr.mxu0 0.0
  %99 = vmatpush1.xpose.msra.mxu0 %v52
  %100 = vmatprep.subr.mxu0 0.0
  %101 = vmatpush1.xpose.msra.mxu0 %v55
  %102 = vmatprep.subr.mxu0 0.0
  %103 = vmatpush1.xpose.msra.mxu0 %v58
  %104 = vmatprep.subr.mxu0 0.0
  %105 = vmatpush1.xpose.msra.mxu0 %v61
  %106 = vmatprep.subr.mxu0 0.0
  %107 = vmatpush1.xpose.msra.mxu0 %v64
  %108 = vmatprep.subr.mxu0 0.0
  %109 = vmatpush1.xpose.msra.mxu0 %v67
  %110 = vmatprep.subr.mxu0 0.0
  %111 = vmatpush1.xpose.msra.mxu0 %v70
  %112 = vmatprep.subr.mxu0 0.0
  %113 = vmatpush1.xpose.msra.mxu0 %v73
  %114 = vmatprep.subr.mxu0 0.0
  %115 = vmatpush1.xpose.msra.mxu0 %v76
  %116 = vmatprep.subr.mxu0 0.0
  %117 = vmatpush1.xpose.msra.mxu0 %v79
  %118 = vmatprep.subr.mxu0 0.0
  %119 = vmatpush1.xpose.msra.mxu0 %v82
  %120 = vmatprep.subr.mxu0 0.0
  %121 = vmatpush1.xpose.msra.mxu0 %v85
  %122 = vmatprep.subr.mxu0 0.0
  %123 = vmatpush1.xpose.msra.mxu0 %v88
  %124 = vmatprep.subr.mxu0 0.0
  %125 = vmatpush1.xpose.msra.mxu0 %v91
  %126 = vmatprep.subr.mxu0 0.0
  %127 = vmatpush1.xpose.msra.mxu0 %v94
  %128 = vmatprep.subr.mxu0 0.0
  %129 = vmatpush1.xpose.msra.mxu0 0.0
  %130 = vmatprep.subr.mxu0 0.0
  %131 = vmatpush1.xpose.msra.mxu0 0.0
  %132 = vmatprep.subr.mxu0 0.0
  %133 = vmatpush1.xpose.msra.mxu0 0.0
  %134 = vmatprep.subr.mxu0 0.0
  %135 = vmatpush1.xpose.msra.mxu0 0.0
  %136 = vmatprep.subr.mxu0 0.0
  %137 = vmatpush1.xpose.msra.mxu0 0.0
  %138 = vmatprep.subr.mxu0 0.0
  %139 = vmatpush1.xpose.msra.mxu0 0.0
  %140 = vmatprep.subr.mxu0 0.0
  %141 = vmatpush1.xpose.msra.mxu0 0.0
  %142 = vmatprep.subr.mxu0 0.0
  %143 = vmatpush1.xpose.msra.mxu0 0.0
  %144 = vmatprep.subr.mxu0 0.0
  %145 = vmatpush1.xpose.msra.mxu0 0.0
  %146 = vmatprep.subr.mxu0 0.0
  %147 = vmatpush1.xpose.msra.mxu0 0.0
  %148 = vmatprep.subr.mxu0 0.0
  %149 = vmatpush1.xpose.msra.mxu0 0.0
  %150 = vmatprep.subr.mxu0 0.0
  %151 = vmatpush1.xpose.msra.mxu0 0.0
  %152 = vmatprep.subr.mxu0 0.0
  %153 = vmatpush1.xpose.msra.mxu0 0.0
  %154 = vmatprep.subr.mxu0 0.0
  %155 = vmatpush1.xpose.msra.mxu0 0.0
  %156 = vmatprep.subr.mxu0 0.0
  %157 = vmatpush1.xpose.msra.mxu0 0.0
  %158 = vmatprep.subr.mxu0 0.0
  %159 = vmatpush1.xpose.msra.mxu0 0.0
  %160 = vmatprep.mubr.f32.mxu0 0.0
  %161 = vmatmul.mubr.f32.gmra.mrb[0].mxu0 %v46
  %v162 = vpop.f32.mrb[0].mxu0
  %v163 = vadd.f32 0.0, %v162
  %v164 = vpop.f32.mrb[0].mxu0
  %165 = vdwg.mxu0
  %s166 = smul.u32 0, 8
  %v167 = vlaneseq
  %v168 = vshrl.u32 %v167, 7
  %v169 = vstv %s166
  %v170 = vadd.s32 %v169, %v168
  %s171 = smul.u32 0, 128
  %v172 = vlaneseq
  %v173 = vand.u32 %v172, 127
  %v174 = vstv %s171
  %v175 = vadd.s32 %v174, %v173
  %vm176 = vcmp.lt.s32.totalorder %v175, 8
  %vm177 = vcmp.ne.s32.totalorder %v170, %v175
  %vm178 = vmand %vm177, %vm176
  %v179 = vld [vmem:[%s0] sm:$0xff]
  %v180 = vld [vmem:[%s1] sm:$0x1]
  %181 = vset.pattern.permute.xlu0 0
  %182 = vperm.xlu0 %181, %v179
  %v183 = vpop.permute.xlu0 %182
  %v184 = vlaneseq
  %v185 = vshrl.u32 %v184, 7
  %v186 = vsub.s32 0, %v185
  %v187 = vrot.slane %v180, %v186
  %vm188 = vcmp.eq.s32.totalorder %v183, %v187
  %vm189 = vmand %vm188, %vm178
  %v190 = vsel %vm178, 1, 0
  %v191 = vcvt.s32.f32 %v190
  %v192 = vsel %vm189, 1, 0
  %v193 = vcvt.s32.f32 %v192
  %v194 = vld [vmem:[#allocation2] sm:$0xff]
  %195 = vmax.xlane.f32.xlu0 %v163
  %v196 = vpop.xlane.xlu0 %195
  %v197 = vmax.f32 %v194, %v196
  %v198 = vsub.f32 %v194, %v197
  %v199 = vmul.f32 %v198, 1.442695
  %v200 = vpow.pop %v199
  %202 = vset.pattern.permute.xlu0 0
  %203 = vperm.xlu0 %202, %v197
  %v204 = vpop.permute.xlu0 %203
  %v206 = vsub.f32 %v163, %v204
  %v207 = vmul.f32 %v206, 1.442695
  %v208 = vpow.pop %v207
  %v209 = vmul.f32 %v208, %v191
  %v210 = vld [vmem:[#allocation3] sm:$0xff]
  %v211 = vmul.f32 %v200, %v210
  %212 = vadd.xlane.f32.xlu0 %v209
  %v213 = vpop.xlane.xlu0 %212
  %v214 = vadd.f32 %v211, %v213
  %vm215 = vcmask 7168
  %216 = vst.msk [vmem:[#allocation3] sm:$0xff] %vm215, %v214
  %217 = vst.msk [vmem:[#allocation2] sm:$0xff] %vm215, %v197
  %v218 = vld [vmem:[#allocation4] sm:$0xff]
  %v219 = vmul.f32 %v193, %v163
  %220 = vadd.xlane.f32.xlu0 %v219
  %v221 = vpop.xlane.xlu0 %220
  %v222 = vadd.f32 %v218, %v221
  %223 = vst.msk [vmem:[#allocation4] sm:$0xff] %vm215, %v222
  %v224 = vld [vmem:[#allocation5] sm:$0xff]
  %225 = vadd.xlane.f32.xlu0 %v193
  %v226 = vpop.xlane.xlu0 %225
  %v227 = vadd.f32 %v224, %v226
  %228 = vst.msk [vmem:[#allocation5] sm:$0xff] %vm215, %v227
  // Predicated region
  $region22: #{tpu_custom_call.1} parent=0 // pred_check
    %p229 = pneg %p17
  $region23: #{tpu_custom_call.1} parent=0 // pred_check_branch
    %231 = sbr.rel (%p229) target = $region25
  $region24: #{tpu_custom_call.1} parent=0 // pred_region
    %v232 = vld [vmem:[#allocation4] sm:$0xff]
    %v233 = vld [vmem:[#allocation5] sm:$0xff]
    %v234 = vrcp.pop %v233
    %v235 = vmul.f32 %v232, %v234
    %v236 = vld [vmem:[#allocation2] sm:$0xff]
    %v237 = vld [vmem:[#allocation3] sm:$0xff]
    %v238 = vlog2.pop %v237
    %v239 = vmul.f32 %v238, 0.6931472
    %v240 = vadd.f32 %v236, %v239
    %v241 = vsub.f32 %v235, %v240
    %v242 = vmul.f32 %v241, -1.0
    %243 = vst.msk [vmem:[%s4] sm:$0xff] %vm215, %v242
  $region25: #{tpu_custom_call.1} parent=0 // pred_fallthru
    _
  // Predicated region
  $region26: #{tpu_custom_call.1} parent=0 // pred_check
    _
  $region27: #{tpu_custom_call.1} parent=0 // pred_check_branch
    %245 = sbr.rel (0) target = $region29
  $region28: #{tpu_custom_call.1} parent=0 // pred_region
    _
  $region29: #{tpu_custom_call.1} parent=0 // pred_fallthru
    _
  // Predicated region
  $region30: #{tpu_custom_call.1} parent=0 // pred_check
    _
  $region31: #{tpu_custom_call.1} parent=0 // pred_check_branch
    %247 = sbr.rel (0) target = $region33
  $region32: #{tpu_custom_call.1} parent=0 // pred_region
    _
  $region33: #{tpu_custom_call.1} parent=0 // pred_fallthru
    _

</llo_original>
